<compile_context>
chip_gen: v7x
topology: tpu7x:2x2x1
jax: 0.10.0
libtpu: 0.0.40
codegen_flags: <defaults>
</compile_context>

<pallas_src>
from functools import partial
import inspect

import numpy as np
import jax
import jax.numpy as jnp
from jax import lax
from jax.experimental import pallas as pl
from jax.experimental.pallas import tpu as pltpu

_MIB = 1024 * 1024


# ---------------------------------------------------------------- window ----
def vorbis_window(win_length: int, dtype=jnp.float32):
    arg = jnp.arange(win_length, dtype=dtype) + 0.5
    return jnp.sin(jnp.pi / 2.0 * jnp.power(jnp.sin(jnp.pi / win_length * arg), 2.0))


# ----------------------------------------------------------------- basis ----
def make_imdct_basis(window):
    """(n_freqs, 2*n_freqs) real IMDCT synthesis basis with the window folded in."""
    win_length = window.shape[-1]
    n = win_length // 2
    j = jnp.arange(win_length, dtype=jnp.float32)[:, None]      # sample within frame
    m = jnp.arange(n, dtype=jnp.float32)[None, :]                # frequency bin
    basis_jm = (2.0 * window.astype(jnp.float32)[:, None] / n) * jnp.cos(
        jnp.pi / (2.0 * n) * (2.0 * j + n + 1.0) * (m + 0.5))    # (2N, N)
    return basis_jm.T                                             # (N, 2N) float32


def split_basis_hi_lo(basis_f32):
    """Pack the f32 basis as bf16 hi + residual-lo planes: (2, N, 2N) bf16."""
    hi = basis_f32.astype(jnp.bfloat16)
    lo = (basis_f32 - hi.astype(jnp.float32)).astype(jnp.bfloat16)
    return jnp.stack([hi, lo], axis=0)


# ---------------------------------------------------------------- sizing ----
def _vmem_capacity_bytes() -> int:
    try:
        return int(pltpu.get_tpu_info().vmem_capacity_bytes)
    except Exception:
        return 128 * _MIB          # v5e / v6e assumption if the query is unavailable


def _vmem_limit_bytes() -> int:
    cap = _vmem_capacity_bytes()
    return int(min(96 * _MIB, (cap * 3) // 4))


def _pick_frame_tile(n_frames: int, n_freqs: int, itemsize: int, budget: int) -> int:
    """Frames per tile: multiple of 128 (layout rule + MXU M-dim) or the full count."""
    if n_frames < 128:
        return n_frames
    cap_tf = ((n_frames + 127) // 128) * 128
    n = n_freqs
    basis_bytes = 2 * n * (2 * n) * 2                 # packed hi/lo bf16 basis, 1 buffer
    for tf in (1024, 512, 256, 128):
        if tf > cap_tf:
            continue
        x_bytes = 2 * n * tf * itemsize               # x tile, double-buffered
        out_bytes = 2 * tf * n * itemsize             # out tile, double-buffered
        temps = (tf * 2 * n * 4                       # y = (tf, 2N) f32
                 + 4 * tf * n * 4                     # first/second/rolled/result f32
                 + 2 * n * tf * 2 * 2)                # bf16 hi/lo copies of the x tile
        if basis_bytes + x_bytes + out_bytes + temps <= budget:
            return tf
    return 128


# ---------------------------------------------------------------- kernel ----
def _split_dot(lhs, basis_hi, basis_lo, *, split_lhs: bool, contract_dim: int):
    """lhs (contracted over `contract_dim` against basis dim 0) -> f32 result using
    native bf16 MXU passes: 3 passes (hi*hi + hi*lo + lo*hi) for f32 lhs, 2 for bf16."""
    dn = (((contract_dim,), (0,)), ((), ()))
    if split_lhs:
        lf = lhs.astype(jnp.float32)
        lh = lf.astype(jnp.bfloat16)
        ll = (lf - lh.astype(jnp.float32)).astype(jnp.bfloat16)
        y = lax.dot_general(lh, basis_hi, dn, preferred_element_type=jnp.float32)
        y = y + lax.dot_general(lh, basis_lo, dn, preferred_element_type=jnp.float32)
        y = y + lax.dot_general(ll, basis_hi, dn, preferred_element_type=jnp.float32)
    else:
        lh = lhs.astype(jnp.bfloat16)
        y = lax.dot_general(lh, basis_hi, dn, preferred_element_type=jnp.float32)
        y = y + lax.dot_general(lh, basis_lo, dn, preferred_element_type=jnp.float32)
    return y


def _imdct_kernel(x_ref, basis_ref, bcol_ref, out_ref, *,
                  tf: int, n_frames: int, needs_mask: bool, split_x: bool):
    # x_ref:     (1, N, tf)    one batch element, freqs x frames (native layout)
    # basis_ref: (2, N, 2N)    bf16 hi/lo windowed IMDCT basis (constant block)
    # bcol_ref:  (1, 1, 1, N)  x column of the NEXT tile's first frame (0 past the end)
    # out_ref:   (1, tf, N)    overlap-added rows: out[r] = second[r] + first[r+1]
    n = basis_ref.shape[1]
    bh = basis_ref[0]
    bl = basis_ref[1]

    # (tf, 2N) windowed frames: contract the freq (sublane) axis of the x tile against
    # the basis on the MXU -- transposed-LHS feed, no separate transpose pass.
    y = _split_dot(x_ref[0], bh, bl, split_lhs=split_x, contract_dim=0)
    first = y[:, :n]                   # (tf, N) first half of each frame
    second = y[:, n:]                  # (tf, N) second half of each frame

    # First half of the *next* tile's first frame, recomputed from its x column
    # (tiny M=1 matmul) -- this replaces the old sequential cross-tile carry so the
    # frame-tile grid axis can be fully parallel.
    nxt = _split_dot(bcol_ref[0, 0], bh, bl, split_lhs=split_x, contract_dim=1)[:, :n]

    # Overlap-add: out[r] = second[r] + first[r+1]; the seam row r = tf-1 takes `nxt`.
    rolled = pltpu.roll(first, shift=tf - 1, axis=0)   # rolled[r] = first[(r+1) % tf]
    row = lax.broadcasted_iota(jnp.int32, (tf, n), 0)
    if needs_mask:
        # Fallback (un-cropped) layout with a partial last frame tile: the row that
        # would add first[n_frames] must add 0 instead of a padded-garbage frame.
        n_valid = n_frames - pl.program_id(1) * tf
        rolled = jnp.where(row >= n_valid - 1, 0.0, rolled)
    ola = second + jnp.where(row == tf - 1, nxt, rolled)
    out_ref[0] = ola.astype(out_ref.dtype)             # single full-tile lane-dense store


# --------------------------------------------------------------- wrapper ----
def _basis_block_spec(n_freqs: int):
    kwargs = {}
    if hasattr(pl, "Buffered") and \
            "pipeline_mode" in inspect.signature(pl.BlockSpec).parameters:
        kwargs["pipeline_mode"] = pl.Buffered(1)        # constant index -> 1 buffer
    return pl.BlockSpec((2, n_freqs, 2 * n_freqs), lambda b, t: (0, 0, 0), **kwargs)


def imdct(specgram, window, center: bool = True, basis_f32=None, basis_packed=None):
    win_length = window.shape[-1]
    *batch, n_freqs, n_frames = specgram.shape
    if win_length != 2 * n_freqs:
        raise ValueError("window length must be 2 * n_freqs")
    if n_frames < 2:
        raise ValueError("imdct kernel requires at least 2 frames")

    B = int(np.prod(batch)) if batch else 1
    N = n_freqs
    dtype = specgram.dtype
    x = specgram.reshape(B, N, n_frames)           # free reshape, NO transpose

    if basis_f32 is None:
        basis_f32 = make_imdct_basis(window)
    basis_f32 = basis_f32.astype(jnp.float32)
    if basis_packed is None:
        basis_packed = split_basis_hi_lo(basis_f32)

    itemsize = jnp.dtype(dtype).itemsize
    split_x = itemsize >= 4                        # f32 input -> 3 bf16 passes, bf16 -> 2
    vmem_limit = _vmem_limit_bytes()
    tf = _pick_frame_tile(n_frames, N, itemsize, (vmem_limit * 85) // 100)
    n_tiles = -(-n_frames // tf)

    # Output row layout: out[q] = full OLA row q+1 (q-th N-sample block of the
    # center-cropped waveform).  Emit only the cropped rows whenever the layout
    # rules allow it, so no post-kernel crop slice is needed.
    direct_crop = center and (tf % 8 == 0) and (n_frames % tf != 1)
    out_rows = (n_frames - 1) if direct_crop else n_frames
    crop_last = center and not direct_crop        # tiny fallback slice (short inputs only)
    needs_mask = (n_frames % tf != 0) and not direct_crop
    if direct_crop:
        # Invariant the mask-free shortcut relies on: padded frames of a partial last
        # x tile only feed output rows >= n_frames-1, which lie past out_rows and are
        # dropped by Pallas at writeback (contraction is over freq only).
        assert -(-out_rows // tf) == n_tiles, (out_rows, tf, n_tiles)

    # Tile-boundary frame columns: bcol[b, t] = x[b, :, (t+1)*tf] (zero past the end).
    cols = np.arange(1, n_tiles + 1) * tf
    in_range = cols < n_frames
    bcol = x[:, :, np.where(in_range, cols, 0)]                    # (B, N, n_tiles)
    bcol = jnp.where(jnp.asarray(in_range)[None, None, :], bcol, jnp.zeros((), dtype))
    bcol = jnp.swapaxes(bcol, 1, 2).reshape(B, n_tiles, 1, N)      # tiny

    kernel = partial(_imdct_kernel, tf=tf, n_frames=n_frames,
                     needs_mask=needs_mask, split_x=split_x)

    passes = 3 if split_x else 2
    flops = passes * 2 * B * n_frames * N * (2 * N) + 2 * B * out_rows * N
    bytes_accessed = (x.size * itemsize + int(basis_packed.size) * 2
                      + int(bcol.size) * itemsize + B * out_rows * N * itemsize)

    main = pl.pallas_call(
        kernel,
        out_shape=jax.ShapeDtypeStruct((B, out_rows, N), dtype),
        grid=(B, n_tiles),
        in_specs=[
            pl.BlockSpec((1, N, tf), lambda b, t: (b, 0, t)),
            _basis_block_spec(N),                      # constant block, single-buffered
            pl.BlockSpec((1, 1, 1, N), lambda b, t: (b, t, 0, 0)),
        ],
        out_specs=pl.BlockSpec((1, tf, N), lambda b, t: (b, t, 0)),
        compiler_params=pltpu.CompilerParams(
            dimension_semantics=("parallel", "parallel"),   # v7x: both TCs even at B==1
            vmem_limit_bytes=vmem_limit),
        cost_estimate=pl.CostEstimate(
            flops=int(flops), transcendentals=0, bytes_accessed=int(bytes_accessed)),
    )(x, basis_packed, bcol)

    waveform = main.reshape(B, out_rows * N)
    if crop_last:
        waveform = waveform[:, : (n_frames - 1) * N]
    if not center:
        # Full OLA row 0 = first half of frame 0 (tiny, computed once outside the grid).
        head = (x[:, :, 0].astype(jnp.float32) @ basis_f32[:, :N]).astype(dtype)
        waveform = jnp.concatenate([head, waveform], axis=-1)
    return waveform.reshape(*batch, -1)


class InverseMDCT:
    def __init__(self, win_length, window_fn=vorbis_window, wkwargs=None, center=True):
        self.window = window_fn(win_length) if wkwargs is None else window_fn(win_length, **wkwargs)
        self.center = center
        # Hoist the cos/window tables (f32 + packed bf16 hi/lo) out of the per-call path.
        self.basis_f32 = make_imdct_basis(self.window)
        self.basis_packed = split_basis_hi_lo(self.basis_f32)

    def __call__(self, specgram, length=None):
        wav = imdct(specgram, self.window, center=self.center,
                    basis_f32=self.basis_f32, basis_packed=self.basis_packed)
        if length is not None:
            wav = wav[..., :length]
        return wav


# ----------------------------------------------------- pure-JAX reference ----
def imdct_reference(specgram, window, center=True):
    """Mirrors the PyTorch twiddle/FFT/fold path (validation only)."""
    win_length = window.shape[-1]
    hop = win_length // 2
    *batch, n_freqs, n_frames = specgram.shape
    B = int(np.prod(batch)) if batch else 1
    x = specgram.reshape(B, n_freqs, n_frames).astype(jnp.float32)
    N = n_freqs
    pre = jnp.exp(-1j * jnp.pi / (2 * N) * (N + 1) * jnp.arange(N))
    post = jnp.exp(-1j * jnp.pi / (2 * N)
                   * jnp.arange(0.5 + N / 2, 2 * N + N / 2 + 0.5)) / N
    xc = x * pre[None, :, None]
    Xf = jnp.fft.fft(xc, n=2 * N, axis=1)
    y = jnp.real(Xf * post[None, :, None])
    frames = 2.0 * y * window.astype(jnp.float32)[None, :, None]    # (B, 2N, F)
    first = jnp.moveaxis(frames[:, :hop, :], -1, 1)                  # (B, F, N)
    second = jnp.moveaxis(frames[:, hop:, :], -1, 1)                 # (B, F, N)
    wav = jnp.zeros((B, n_frames + 1, hop), jnp.float32)
    wav = wav.at[:, :-1].add(first)
    wav = wav.at[:, 1:].add(second)
    wav = wav.reshape(B, -1)
    if center:
        wav = wav[:, hop:-hop]
    return wav.reshape(*batch, -1)


# ------------------------------------------------------------------ main ----
if __name__ == "__main__":
    key = jax.random.PRNGKey(0)

    def check(seed, shape, center, rtol, atol):
        n_freqs = shape[-2]
        window = vorbis_window(2 * n_freqs)
        spec = jax.random.normal(jax.random.fold_in(key, seed), shape, dtype=jnp.float32)
        out = jax.block_until_ready(imdct(spec, window, center=center))
        ref = imdct_reference(spec, window, center=center)
        assert out.shape == ref.shape, (out.shape, ref.shape)
        np.testing.assert_allclose(np.asarray(out), np.asarray(ref), rtol=rtol, atol=atol)

    # Small cases matching the original module config (n_freqs=8, n_frames=8).
    check(1, (2, 4, 8, 8), center=True, rtol=1e-3, atol=1e-4)
    check(2, (2, 4, 8, 8), center=False, rtol=1e-3, atol=1e-4)
    # Multi-tile paths: parallel frame tiles, seam columns, partial edge blocks.
    check(3, (2, 128, 333), center=True, rtol=1e-3, atol=1e-4)
    check(4, (1, 128, 300), center=False, rtol=1e-3, atol=1e-4)

    # Module-style call (bases cached in __init__), exact original toy config.
    model = InverseMDCT(16)
    spec = jax.random.normal(key, (2, 4, 8, 8), dtype=jnp.float32)
    out = jax.block_until_ready(model(spec))
    ref = imdct_reference(spec, model.window)
    assert out.shape == (2, 4, 8 * (8 - 1)), out.shape
    np.testing.assert_allclose(np.asarray(out), np.asarray(ref), rtol=1e-3, atol=1e-4)

    print("KERNEL_OK")
</pallas_src>

<mosaic_0001>
module attributes {stable_mosaic.version = 11 : i64} {
  func.func @_imdct_kernel(%arg0: i32, %arg1: i32, %arg2: memref<1x8x8xf32, #tpu.memory_space<vmem>>, %arg3: memref<2x8x16xbf16, #tpu.memory_space<vmem>>, %arg4: memref<1x1x1x8xf32, #tpu.memory_space<vmem>>, %arg5: memref<1x8x8xf32, #tpu.memory_space<vmem>>) attributes {dimension_semantics = [#tpu.dimension_semantics<parallel>, #tpu.dimension_semantics<parallel>], iteration_bounds = array<i64: 8, 1>, scalar_prefetch = 0 : i64, scratch_operands = 0 : i64, tpu.core_type = #tpu.core_type<tc>, window_params = [{transform_indices = @transform_0, window_bounds = array<i64: 1, 8, 8>}, {pipeline_mode = #tpu.pipeline_mode<synchronous>, transform_indices = @transform_1, window_bounds = array<i64: 2, 8, 16>}, {transform_indices = @transform_2, window_bounds = array<i64: 1, 1, 1, 8>}, {transform_indices = @transform_3, window_bounds = array<i64: 1, 8, 8>}]} {
    %c0 = arith.constant 0 : index
    %c0_0 = arith.constant 0 : index
    %c0_1 = arith.constant 0 : index
    %0 = vector.load %arg3[%c0, %c0_0, %c0_1] : memref<2x8x16xbf16, #tpu.memory_space<vmem>>, vector<1x8x16xbf16>
    %1 = vector.shape_cast %0 : vector<1x8x16xbf16> to vector<8x16xbf16>
    %c1 = arith.constant 1 : index
    %c0_2 = arith.constant 0 : index
    %c0_3 = arith.constant 0 : index
    %2 = vector.load %arg3[%c1, %c0_2, %c0_3] : memref<2x8x16xbf16, #tpu.memory_space<vmem>>, vector<1x8x16xbf16>
    %3 = vector.shape_cast %2 : vector<1x8x16xbf16> to vector<8x16xbf16>
    %c0_4 = arith.constant 0 : index
    %c0_5 = arith.constant 0 : index
    %c0_6 = arith.constant 0 : index
    %4 = vector.load %arg2[%c0_4, %c0_5, %c0_6] : memref<1x8x8xf32, #tpu.memory_space<vmem>>, vector<1x8x8xf32>
    %5 = vector.shape_cast %4 : vector<1x8x8xf32> to vector<8x8xf32>
    %6 = arith.truncf %5 : vector<8x8xf32> to vector<8x8xbf16>
    %7 = arith.extf %6 : vector<8x8xbf16> to vector<8x8xf32>
    %8 = arith.subf %5, %7 : vector<8x8xf32>
    %9 = arith.truncf %8 : vector<8x8xf32> to vector<8x8xbf16>
    %cst = arith.constant dense<0.000000e+00> : vector<8x16xf32>
    %10 = tpu.matmul %6, %1, %cst {dimension_numbers = #tpu.dot_dimension_numbers<[0], [0], [1], [1], [0, 1, 1, 1], [], []>} : vector<8x8xbf16>, vector<8x16xbf16>, vector<8x16xf32> -> vector<8x16xf32>
    %cst_7 = arith.constant dense<0.000000e+00> : vector<8x16xf32>
    %11 = tpu.matmul %6, %3, %cst_7 {dimension_numbers = #tpu.dot_dimension_numbers<[0], [0], [1], [1], [0, 1, 1, 1], [], []>} : vector<8x8xbf16>, vector<8x16xbf16>, vector<8x16xf32> -> vector<8x16xf32>
    %12 = arith.addf %10, %11 : vector<8x16xf32>
    %cst_8 = arith.constant dense<0.000000e+00> : vector<8x16xf32>
    %13 = tpu.matmul %9, %1, %cst_8 {dimension_numbers = #tpu.dot_dimension_numbers<[0], [0], [1], [1], [0, 1, 1, 1], [], []>} : vector<8x8xbf16>, vector<8x16xbf16>, vector<8x16xf32> -> vector<8x16xf32>
    %14 = arith.addf %12, %13 : vector<8x16xf32>
    %15 = vector.extract_strided_slice %14 {offsets = [0, 0], sizes = [8, 8], strides = [1, 1]} : vector<8x16xf32> to vector<8x8xf32>
    %16 = vector.extract_strided_slice %14 {offsets = [0, 8], sizes = [8, 8], strides = [1, 1]} : vector<8x16xf32> to vector<8x8xf32>
    %c0_9 = arith.constant 0 : index
    %c0_10 = arith.constant 0 : index
    %c0_11 = arith.constant 0 : index
    %c0_12 = arith.constant 0 : index
    %17 = vector.load %arg4[%c0_9, %c0_10, %c0_11, %c0_12] : memref<1x1x1x8xf32, #tpu.memory_space<vmem>>, vector<1x1x1x8xf32>
    %18 = vector.shape_cast %17 : vector<1x1x1x8xf32> to vector<1x8xf32>
    %19 = arith.truncf %18 : vector<1x8xf32> to vector<1x8xbf16>
    %20 = arith.extf %19 : vector<1x8xbf16> to vector<1x8xf32>
    %21 = arith.subf %18, %20 : vector<1x8xf32>
    %22 = arith.truncf %21 : vector<1x8xf32> to vector<1x8xbf16>
    %cst_13 = arith.constant dense<0.000000e+00> : vector<1x16xf32>
    %23 = tpu.matmul %19, %1, %cst_13 {dimension_numbers = #tpu.dot_dimension_numbers<[1], [0], [0], [1], [0, 0, 1, 1], [], []>} : vector<1x8xbf16>, vector<8x16xbf16>, vector<1x16xf32> -> vector<1x16xf32>
    %cst_14 = arith.constant dense<0.000000e+00> : vector<1x16xf32>
    %24 = tpu.matmul %19, %3, %cst_14 {dimension_numbers = #tpu.dot_dimension_numbers<[1], [0], [0], [1], [0, 0, 1, 1], [], []>} : vector<1x8xbf16>, vector<8x16xbf16>, vector<1x16xf32> -> vector<1x16xf32>
    %25 = arith.addf %23, %24 : vector<1x16xf32>
    %cst_15 = arith.constant dense<0.000000e+00> : vector<1x16xf32>
    %26 = tpu.matmul %22, %1, %cst_15 {dimension_numbers = #tpu.dot_dimension_numbers<[1], [0], [0], [1], [0, 0, 1, 1], [], []>} : vector<1x8xbf16>, vector<8x16xbf16>, vector<1x16xf32> -> vector<1x16xf32>
    %27 = arith.addf %25, %26 : vector<1x16xf32>
    %28 = vector.extract_strided_slice %27 {offsets = [0, 0], sizes = [1, 8], strides = [1, 1]} : vector<1x16xf32> to vector<1x8xf32>
    %c7_i32 = arith.constant 7 : i32
    %29 = tpu.dynamic_rotate %15 by %c7_i32 dim 0 : vector<8x8xf32>, i32 -> vector<8x8xf32>
    %30 = tpu.iota {dimensions = array<i32: 0>} : vector<8x8xi32>
    %c7_i32_16 = arith.constant 7 : i32
    %31 = vector.broadcast %c7_i32_16 : i32 to vector<8x8xi32>
    %32 = arith.cmpi eq, %30, %31 : vector<8x8xi32>
    %33 = vector.shape_cast %28 : vector<1x8xf32> to vector<1x8xf32>
    %34 = vector.broadcast %33 : vector<1x8xf32> to vector<8x8xf32>
    %35 = arith.select %32, %34, %29 : vector<8x8xi1>, vector<8x8xf32>
    %36 = arith.addf %16, %35 : vector<8x8xf32>
    %c0_17 = arith.constant 0 : index
    %c0_18 = arith.constant 0 : index
    %c0_19 = arith.constant 0 : index
    %37 = vector.load %arg5[%c0_17, %c0_18, %c0_19] : memref<1x8x8xf32, #tpu.memory_space<vmem>>, vector<1x8x8xf32>
    %38 = vector.shape_cast %37 : vector<1x8x8xf32> to vector<8x8xf32>
    %39 = vector.shape_cast %36 : vector<8x8xf32> to vector<1x8x8xf32>
    tpu.vector_store %arg5[%c0_17, %c0_18, %c0_19], %39 {strides = array<i32>} : memref<1x8x8xf32, #tpu.memory_space<vmem>>, vector<1x8x8xf32>,
    return
  }
  func.func @transform_0(%arg0: i32, %arg1: i32) -> (i32, i32, i32) {
    %c0_i32 = arith.constant 0 : i32
    %c0_i32_0 = arith.constant 0 : i32
    return %arg0, %c0_i32, %arg1 : i32, i32, i32
  }
  func.func @transform_1(%arg0: i32, %arg1: i32) -> (i32, i32, i32) {
    %c0_i32 = arith.constant 0 : i32
    %c0_i32_0 = arith.constant 0 : i32
    %c0_i32_1 = arith.constant 0 : i32
    %c0_i32_2 = arith.constant 0 : i32
    return %c0_i32, %c0_i32_0, %c0_i32_1 : i32, i32, i32
  }
  func.func @transform_2(%arg0: i32, %arg1: i32) -> (i32, i32, i32, i32) {
    %c0_i32 = arith.constant 0 : i32
    %c0_i32_0 = arith.constant 0 : i32
    %c0_i32_1 = arith.constant 0 : i32
    return %arg0, %arg1, %c0_i32, %c0_i32_0 : i32, i32, i32, i32
  }
  func.func @transform_3(%arg0: i32, %arg1: i32) -> (i32, i32, i32) {
    %c0_i32 = arith.constant 0 : i32
    %c0_i32_0 = arith.constant 0 : i32
    return %arg0, %arg1, %c0_i32 : i32, i32, i32
  }
}

</mosaic_0001>

<llo_original>
// kernel: tpu_custom_call.1
$region0: #{tpu_custom_call.1}
  #allocation0 [shape = 'u32[]', space=smem, size = 0x4, offset = 0x4, fixed_abs, tag = 'smem constant byte address 0x4 - core index']
  #allocation1 [shape = 'u32[144,128]{1,0:T(1,128)}', space=vmem, size = 0x12000, scoped, tag = 'internal scratch']
  %s0 = inlined_call_operand.hbm [shape: f32[8,8,8], index: 0, kind: input, shape index: {}]
  %s1 = inlined_call_operand.hbm [shape: bf16[2,8,16], index: 1, kind: input, shape index: {}]
  %s2 = inlined_call_operand.hbm [shape: f32[8,1,1,8], index: 2, kind: input, shape index: {}]
  %s3 = inlined_call_operand.hbm [shape: f32[8,7,8], index: 3, kind: output, shape index: {}]
  %s4 = sld [smem:[#allocation0]]
  $region57: #{tpu_custom_call.1} parent=0
    _
  %s6 = ssub.s32 1, %s4
  %s7 = scalar_select 0, %s6, %s4
  $region1: #{tpu_custom_call.1} parent=0
    #allocation2 [shape = 'u8[8192]{0}', space=vmem, size = 0x2000, scoped, tag = 'input window, operand 0']
    #allocation3 [shape = 's32[2]{0}', space=sflag, size = 0x8, scoped, tag = 'scoped memory for tpu_custom_call.1']
    #allocation4 [shape = 's32[2]{0}', space=sflag, size = 0x8, scoped, tag = 'scoped memory for tpu_custom_call.1']
    #allocation5 [shape = 'u8[4096]{0}', space=vmem, size = 0x1000, scoped, tag = 'input window, operand 1, single buffered']
    #allocation6 [shape = 's32[1]{0}', space=sflag, size = 0x4, scoped, tag = 'scoped memory for tpu_custom_call.1']
    #allocation7 [shape = 'u8[1024]{0}', space=vmem, size = 0x400, scoped, tag = 'input window, operand 2']
    #allocation8 [shape = 'u8[8192]{0}', space=vmem, size = 0x2000, scoped, tag = 'output window, operand 0']
    %8 = vsyncpa [#allocation3], 0
    %s9 = scalar_lea.sflag [#allocation3], 1
    %10 = vsyncpa %s9, 0
    %11 = vsyncpa [#allocation6], 0
    %12 = vsyncpa [#allocation4], 0
    %s13 = scalar_lea.sflag [#allocation4], 1
    %14 = vsyncpa %s13, 0
    loop: start=0, step=1, limit=10
    $region2: #{tpu_custom_call.1} parent=1 // loop_pre_header
      _
    $region3: #{tpu_custom_call.1} parent=1 // loop_header
      %s16 = sphi 0, %s20
      %p17 = scmp.ge.s32.totalorder %s16, 10
      %s23 = sphi 0, %s35
      %s24 = sphi 0, %s31
      %s25 = sphi 0, %s23
      %s26 = sphi 0, %s24
      %s27 = sphi 0, %s25
      %s28 = sphi 0, %s26
      %s40 = sphi 0, %s42
      %s43 = sphi 0, %s40
      %s44 = sphi 0, %s43
      %s60 = sphi 0, %s44
      %s64 = sphi 0, %s64
      %s66 = sphi 0, %s64
      %s67 = sphi 0, %s66
      %s81 = sphi 0, %s67
      %s89 = sphi 0, %s91
      %s92 = sphi 0, %s89
      %s93 = sphi 0, %s92
      %s109 = sphi 0, %s93
      %s117 = sphi 0, %s119
      %s120 = sphi 0, %s117
      %s121 = sphi 0, %s120
      %s137 = sphi 0, %s121
    $region4: #{tpu_custom_call.1} parent=1 // loop_header_branch
      %19 = sbr.rel (%p17) target = $region8
    $region5: #{tpu_custom_call.1} parent=1 // loop_body
      %s21 = ssub.s32 %s16, 1
      %s22 = ssub.s32 %s16, 2
      %s29 = sadd.s32 1, %s24
      %p30 = scmp.ge.s32.totalorder %s29, 1
      %s31 = scalar_select %p30, 0, %s29
      %s32 = sadd.s32 1, %s23
      %s33 = scalar_select %p30, %s32, %s23
      %p34 = scmp.ge.s32.totalorder %s33, 8
      %s35 = scalar_select %p34, 0, %s33
      %s36 = ssub.s32 %s23, %s35
      %s37 = ssub.s32 %s24, %s31
      %s38 = sor.u32 %s36, %s37
      %p39 = scmp.eq.s32.totalorder %s38, 0
      %s41 = sadd.s32 %s40, 1
      %s42 = scalar_select %p39, %s40, %s41
      %p45 = pneg %p39
      %p46 = scmp.eq.s32.totalorder %s16, 7
      %p47 = por %p45, %p46
      %p48 = scmp.ne.s32.totalorder %s40, %s43
      %p49 = scmp.eq.s32.totalorder %s16, 0
      %p50 = por %p48, %p49
      %p51 = scmp.ne.s32.totalorder %s40, %s43
      %p52 = scmp.eq.s32.totalorder %s21, 7
      %p53 = por %p51, %p52
      %p54 = scmp.ne.s32.totalorder %s43, %s44
      %p55 = scmp.eq.s32.totalorder %s21, 0
      %p56 = por %p54, %p55
      %p57 = scmp.ne.s32.totalorder %s43, %s44
      %p58 = scmp.eq.s32.totalorder %s22, 7
      %p59 = por %p57, %p58
      %p61 = scmp.ne.s32.totalorder %s44, %s60
      %p62 = scmp.eq.s32.totalorder %s22, 0
      %p63 = por %p61, %p62
      %s65 = sadd.s32 %s64, 1
      %p68 = scmp.eq.s32.totalorder %s16, 7
      %p69 = scmp.ne.s32.totalorder %s64, %s66
      %p70 = scmp.eq.s32.totalorder %s16, 0
      %p71 = por %p69, %p70
      %p72 = scmp.ne.s32.totalorder %s64, %s66
      %p73 = scmp.eq.s32.totalorder %s21, 7
      %p74 = por %p72, %p73
      %p75 = scmp.ne.s32.totalorder %s66, %s67
      %p76 = scmp.eq.s32.totalorder %s21, 0
      %p77 = por %p75, %p76
      %p78 = scmp.ne.s32.totalorder %s66, %s67
      %p79 = scmp.eq.s32.totalorder %s22, 7
      %p80 = por %p78, %p79
      %p82 = scmp.ne.s32.totalorder %s67, %s81
      %p83 = scmp.eq.s32.totalorder %s22, 0
      %p84 = por %p82, %p83
      %s85 = ssub.s32 %s23, %s35
      %s86 = ssub.s32 %s24, %s31
      %s87 = sor.u32 %s85, %s86
      %p88 = scmp.eq.s32.totalorder %s87, 0
      %s90 = sadd.s32 %s89, 1
      %s91 = scalar_select %p88, %s89, %s90
      %p94 = pneg %p88
      %p95 = scmp.eq.s32.totalorder %s16, 7
      %p96 = por %p94, %p95
      %p97 = scmp.ne.s32.totalorder %s89, %s92
      %p98 = scmp.eq.s32.totalorder %s16, 0
      %p99 = por %p97, %p98
      %p100 = scmp.ne.s32.totalorder %s89, %s92
      %p101 = scmp.eq.s32.totalorder %s21, 7
      %p102 = por %p100, %p101
      %p103 = scmp.ne.s32.totalorder %s92, %s93
      %p104 = scmp.eq.s32.totalorder %s21, 0
      %p105 = por %p103, %p104
      %p106 = scmp.ne.s32.totalorder %s92, %s93
      %p107 = scmp.eq.s32.totalorder %s22, 7
      %p108 = por %p106, %p107
      %p110 = scmp.ne.s32.totalorder %s93, %s109
      %p111 = scmp.eq.s32.totalorder %s22, 0
      %p112 = por %p110, %p111
      %s113 = ssub.s32 %s23, %s35
      %s114 = ssub.s32 %s24, %s31
      %s115 = sor.u32 %s113, %s114
      %p116 = scmp.eq.s32.totalorder %s115, 0
      %s118 = sadd.s32 %s117, 1
      %s119 = scalar_select %p116, %s117, %s118
      %p122 = pneg %p116
      %p123 = scmp.eq.s32.totalorder %s16, 7
      %p124 = por %p122, %p123
      %p125 = scmp.ne.s32.totalorder %s117, %s120
      %p126 = scmp.eq.s32.totalorder %s16, 0
      %p127 = por %p125, %p126
      %p128 = scmp.ne.s32.totalorder %s117, %s120
      %p129 = scmp.eq.s32.totalorder %s21, 7
      %p130 = por %p128, %p129
      %p131 = scmp.ne.s32.totalorder %s120, %s121
      %p132 = scmp.eq.s32.totalorder %s21, 0
      %p133 = por %p131, %p132
      %p134 = scmp.ne.s32.totalorder %s120, %s121
      %p135 = scmp.eq.s32.totalorder %s22, 7
      %p136 = por %p134, %p135
      %p138 = scmp.ne.s32.totalorder %s121, %s137
      %p139 = scmp.eq.s32.totalorder %s22, 0
      %p140 = por %p138, %p139
      %p141 = scmp.le.s32.totalorder 1, %s16
      %p142 = scmp.lt.s32.totalorder %s16, 9
      %p143 = pnand %p141, %p142
      %p144 = pneg %p143
      // Predicated region
      $region9: #{tpu_custom_call.1} parent=5 // pred_check
        _
      $region10: #{tpu_custom_call.1} parent=5 // pred_check_branch
        %146 = sbr.rel (%p143) target = $region12
      $region11: #{tpu_custom_call.1} parent=5 // pred_region
        %s147 = ssub.s32 %s16, 1
        // Predicated region
        $region13: #{tpu_custom_call.1} parent=11 // pred_check
          %p148 = pneg %p77
        $region14: #{tpu_custom_call.1} parent=11 // pred_check_branch
          %150 = sbr.rel (%p148) target = $region16
        $region15: #{tpu_custom_call.1} parent=11 // pred_region
          %s152 = ssub.s32 128, 128
          %153 = vsyncadd [#allocation6], %s152
          %s154 = sshll.u32 [#allocation5], 4
          %s155 = int_to_ptr.vmem [resolvable:$true] %s154
          %160 = dma.hbm_to_vmem [thread:$0]  %s1, 128, %s155, [#allocation6], 64, 64, 4
        $region16: #{tpu_custom_call.1} parent=11 // pred_fallthru
          _
      $region12: #{tpu_custom_call.1} parent=5 // pred_fallthru
        _
      %p161 = scmp.lt.s32.totalorder %s16, 8
      // Predicated region
      $region17: #{tpu_custom_call.1} parent=5 // pred_check
        %p162 = pneg %p161
      $region18: #{tpu_custom_call.1} parent=5 // pred_check_branch
        %164 = sbr.rel (%p162) target = $region20
      $region19: #{tpu_custom_call.1} parent=5 // pred_region
        // Predicated region
        $region21: #{tpu_custom_call.1} parent=19 // pred_check
          %p165 = pneg %p50
        $region22: #{tpu_custom_call.1} parent=19 // pred_check_branch
          %167 = sbr.rel (%p165) target = $region24
        $region23: #{tpu_custom_call.1} parent=19 // pred_region
          %s168 = sand.u32 %s16, 1
          %s169 = scalar_lea.sflag [#allocation3], %s168
          %s170 = sand.u32 %s40, 1
          %s171 = smul.addr %s170, 8
          %s172 = scalar_lea.vmem [#allocation2], %s171
          %s174 = ssub.s32 128, 128
          %175 = vsyncadd %s169, %s174
          %s176 = sadd.s32 %s24, %s23
          %s177 = smul.addr %s176, 128
          %s178 = scalar_lea.hbm %s0, %s177
          %s180 = sshll.u32 %s172, 4
          %s181 = int_to_ptr.vmem [resolvable:$true] %s180
          %183 = dma.hbm_to_vmem [thread:$0]  %s178, 128, %s181, %s169
        $region24: #{tpu_custom_call.1} parent=19 // pred_fallthru
          _
        // Predicated region
        $region25: #{tpu_custom_call.1} parent=19 // pred_check
          %p184 = pneg %p99
        $region26: #{tpu_custom_call.1} parent=19 // pred_check_branch
          %186 = sbr.rel (%p184) target = $region28
        $region27: #{tpu_custom_call.1} parent=19 // pred_region
          %s187 = sand.u32 %s16, 1
          %s188 = scalar_lea.sflag [#allocation3], %s187
          %s189 = sand.u32 %s89, 1
          %s190 = scalar_lea.vmem [#allocation7], %s189
          %s192 = ssub.s32 16, 16
          %193 = vsyncadd %s188, %s192
          %s194 = sadd.s32 %s24, %s23
          %s195 = smul.addr %s194, 16
          %s196 = scalar_lea.hbm %s2, %s195
          %s198 = sshll.u32 %s190, 4
          %s199 = int_to_ptr.vmem [resolvable:$true] %s198
          %201 = dma.hbm_to_vmem [thread:$0]  %s196, 16, %s199, %s188
        $region28: #{tpu_custom_call.1} parent=19 // pred_fallthru
          _
      $region20: #{tpu_custom_call.1} parent=5 // pred_fallthru
        _
      %p202 = scmp.le.s32.totalorder 1, %s16
      %p203 = scmp.lt.s32.totalorder %s16, 9
      %p204 = pnand %p202, %p203
      %p205 = pneg %p204
      // Predicated region
      $region29: #{tpu_custom_call.1} parent=5 // pred_check
        _
      $region30: #{tpu_custom_call.1} parent=5 // pred_check_branch
        %207 = sbr.rel (%p204) target = $region32
      $region31: #{tpu_custom_call.1} parent=5 // pred_region
        %s208 = ssub.s32 %s16, 1
        %s209 = sand.u32 %s21, 1
        %s210 = scalar_lea.sflag [#allocation3], %s209
        %s211 = sand.u32 %s43, 1
        %s212 = smul.addr %s211, 8
        %s213 = scalar_lea.vmem [#allocation2], %s212
        // Predicated region
        $region33: #{tpu_custom_call.1} parent=31 // pred_check
          %p214 = pneg %p56
        $region34: #{tpu_custom_call.1} parent=31 // pred_check_branch
          %216 = sbr.rel (%p214) target = $region36
        $region35: #{tpu_custom_call.1} parent=31 // pred_region
          %217 = dma.done %s210, 128
        $region36: #{tpu_custom_call.1} parent=31 // pred_fallthru
          _
        // Predicated region
        $region37: #{tpu_custom_call.1} parent=31 // pred_check
          %p218 = pneg %p77
        $region38: #{tpu_custom_call.1} parent=31 // pred_check_branch
          %220 = sbr.rel (%p218) target = $region40
        $region39: #{tpu_custom_call.1} parent=31 // pred_region
          %221 = dma.done [#allocation6], 128
        $region40: #{tpu_custom_call.1} parent=31 // pred_fallthru
          _
        %s222 = sand.u32 %s21, 1
        %s223 = scalar_lea.sflag [#allocation3], %s222
        %s224 = sand.u32 %s92, 1
        %s225 = scalar_lea.vmem [#allocation7], %s224
        // Predicated region
        $region41: #{tpu_custom_call.1} parent=31 // pred_check
          %p226 = pneg %p105
        $region42: #{tpu_custom_call.1} parent=31 // pred_check_branch
          %228 = sbr.rel (%p226) target = $region44
        $region43: #{tpu_custom_call.1} parent=31 // pred_region
          %229 = dma.done %s223, 16
        $region44: #{tpu_custom_call.1} parent=31 // pred_fallthru
          _
        %s230 = sand.u32 %s21, 1
        %s231 = scalar_lea.sflag [#allocation3], %s230
        %s232 = sand.u32 %s43, 1
        %s233 = smul.addr %s232, 8
        %s234 = scalar_lea.vmem [#allocation2], %s233
        %p235 = pneg %p56
        %p236 = pneg %p53
        %p237 = pneg %p77
        %p238 = pneg %p74
        %s239 = sand.u32 %s21, 1
        %s240 = scalar_lea.sflag [#allocation3], %s239
        %s241 = sand.u32 %s92, 1
        %s242 = scalar_lea.vmem [#allocation7], %s241
        %p243 = pneg %p105
        %p244 = pneg %p102
        %p245 = pneg %p133
        %p246 = pneg %p130
        %s247 = sand.u32 %s120, 1
        %s248 = scalar_lea.sflag [#allocation4], %s247
        %s249 = sand.u32 %s120, 1
        %s250 = smul.addr %s249, 8
        %s251 = scalar_lea.vmem [#allocation8], %s250
        %v253 = vld [vmem:[#allocation5] sm:$0xf]
        %s254 = scalar_lea.vmem [#allocation5], 4
        %v255 = vld [vmem:[%s254] sm:$0xf]
        %v256 = vld [vmem:[%s213] sm:$0xff]
        %v257 = vpack.c.bf16 %v256, %v256
        %v258 = vunpack.c.l.bf16 %v257
        %v259 = vsub.f32 %v256, %v258
        %v260 = vpack.c.bf16 %v259, %v259
        %261 = vxpose.xlu0.c.b16.start [1/8] %v257, 128
        %262 = vxpose.xlu0.c.b16.cont [2/8] 0, 128
        %263 = vxpose.xlu0.c.b16.cont [3/8] 0, 128
        %264 = vxpose.xlu0.c.b16.cont [4/8] 0, 128
        %265 = vxpose.xlu0.c.b16.cont [5/8] 0, 128
        %266 = vxpose.xlu0.c.b16.cont [6/8] 0, 128
        %267 = vxpose.xlu0.c.b16.cont [7/8] 0, 128
        %268 = vxpose.xlu0.c.b16.end [8/8] 0, 128
        %v269 = vpop.trf.xlu0
        %v270 = vpop.trf.xlu0
        %v271 = vpop.trf.xlu0
        %v272 = vpop.trf.xlu0
        %v273 = vpop.trf.xlu0
        %v274 = vpop.trf.xlu0
        %v275 = vpop.trf.xlu0
        %v276 = vpop.trf.xlu0
        %vm277 = vcmask 64512
        %v279 = vsel %vm277, %v269, 0
        %vm281 = vcmask 1043456
        %v283 = vsel %vm281, %v255, 0
        %285 = vmatprep.subr.bf16.mxu0 0
        %286 = vmatpush1.bf16.msra.mxu0 %v283
        %287 = vmatprep.subr.bf16.mxu0 0
        %288 = vmatpush1.bf16.msra.mxu0 0
        %289 = vmatprep.subr.bf16.mxu0 0
        %290 = vmatpush1.bf16.msra.mxu0 0
        %291 = vmatprep.subr.bf16.mxu0 0
        %292 = vmatpush1.bf16.msra.mxu0 0
        %293 = vmatprep.subr.bf16.mxu0 0
        %294 = vmatpush1.bf16.msra.mxu0 0
        %295 = vmatprep.subr.bf16.mxu0 0
        %296 = vmatpush1.bf16.msra.mxu0 0
        %297 = vmatprep.subr.bf16.mxu0 0
        %298 = vmatpush1.bf16.msra.mxu0 0
        %299 = vmatprep.subr.bf16.mxu0 0
        %300 = vmatpush1.bf16.msra.mxu0 0
        %301 = vmatprep.subr.bf16.mxu0 0
        %302 = vmatpush1.bf16.msra.mxu0 0
        %303 = vmatprep.subr.bf16.mxu0 0
        %304 = vmatpush1.bf16.msra.mxu0 0
        %305 = vmatprep.subr.bf16.mxu0 0
        %306 = vmatpush1.bf16.msra.mxu0 0
        %307 = vmatprep.subr.bf16.mxu0 0
        %308 = vmatpush1.bf16.msra.mxu0 0
        %309 = vmatprep.subr.bf16.mxu0 0
        %310 = vmatpush1.bf16.msra.mxu0 0
        %311 = vmatprep.subr.bf16.mxu0 0
        %312 = vmatpush1.bf16.msra.mxu0 0
        %313 = vmatprep.subr.bf16.mxu0 0
        %314 = vmatpush1.bf16.msra.mxu0 0
        %315 = vmatprep.subr.bf16.mxu0 0
        %316 = vmatpush1.bf16.msra.mxu0 0
        %317 = vmatprep.mubr.bf16.mxu0 0
        %318 = vmatmul.mubr.bf16.gmra.mrb[0].mxu0 %v279
        %v319 = vpop.f32.mrb[0].mxu0
        %v320 = vadd.f32 0.0, %v319
        %v321 = vpop.f32.mrb[0].mxu0
        %v322 = vpop.f32.mrb[0].mxu0
        %v323 = vpop.f32.mrb[0].mxu0
        %324 = vdwg.mxu0
        %v326 = vsel %vm281, %v253, 0
        %328 = vmatprep.subr.bf16.mxu0 0
        %329 = vmatpush1.bf16.msra.mxu0 %v326
        %330 = vmatprep.subr.bf16.mxu0 0
        %331 = vmatpush1.bf16.msra.mxu0 0
        %332 = vmatprep.subr.bf16.mxu0 0
        %333 = vmatpush1.bf16.msra.mxu0 0
        %334 = vmatprep.subr.bf16.mxu0 0
        %335 = vmatpush1.bf16.msra.mxu0 0
        %336 = vmatprep.subr.bf16.mxu0 0
        %337 = vmatpush1.bf16.msra.mxu0 0
        %338 = vmatprep.subr.bf16.mxu0 0
        %339 = vmatpush1.bf16.msra.mxu0 0
        %340 = vmatprep.subr.bf16.mxu0 0
        %341 = vmatpush1.bf16.msra.mxu0 0
        %342 = vmatprep.subr.bf16.mxu0 0
        %343 = vmatpush1.bf16.msra.mxu0 0
        %344 = vmatprep.subr.bf16.mxu0 0
        %345 = vmatpush1.bf16.msra.mxu0 0
        %346 = vmatprep.subr.bf16.mxu0 0
        %347 = vmatpush1.bf16.msra.mxu0 0
        %348 = vmatprep.subr.bf16.mxu0 0
        %349 = vmatpush1.bf16.msra.mxu0 0
        %350 = vmatprep.subr.bf16.mxu0 0
        %351 = vmatpush1.bf16.msra.mxu0 0
        %352 = vmatprep.subr.bf16.mxu0 0
        %353 = vmatpush1.bf16.msra.mxu0 0
        %354 = vmatprep.subr.bf16.mxu0 0
        %355 = vmatpush1.bf16.msra.mxu0 0
        %356 = vmatprep.subr.bf16.mxu0 0
        %357 = vmatpush1.bf16.msra.mxu0 0
        %358 = vmatprep.subr.bf16.mxu0 0
        %359 = vmatpush1.bf16.msra.mxu0 0
        %360 = vmatprep.mubr.bf16.mxu0 0
        %361 = vmatmul.mubr.bf16.gmra.mrb[0].mxu0 %v279
        %v362 = vpop.f32.mrb[0].mxu0
        %v363 = vadd.f32 %v320, %v362
        %v364 = vpop.f32.mrb[0].mxu0
        %v365 = vpop.f32.mrb[0].mxu0
        %v366 = vpop.f32.mrb[0].mxu0
        %367 = vdwg.mxu0
        %368 = vxpose.xlu0.c.b16.start [1/8] %v260, 128
        %369 = vxpose.xlu0.c.b16.cont [2/8] 0, 128
        %370 = vxpose.xlu0.c.b16.cont [3/8] 0, 128
        %371 = vxpose.xlu0.c.b16.cont [4/8] 0, 128
        %372 = vxpose.xlu0.c.b16.cont [5/8] 0, 128
        %373 = vxpose.xlu0.c.b16.cont [6/8] 0, 128
        %374 = vxpose.xlu0.c.b16.cont [7/8] 0, 128
        %375 = vxpose.xlu0.c.b16.end [8/8] 0, 128
        %v376 = vpop.trf.xlu0
        %v377 = vpop.trf.xlu0
        %v378 = vpop.trf.xlu0
        %v379 = vpop.trf.xlu0
        %v380 = vpop.trf.xlu0
        %v381 = vpop.trf.xlu0
        %v382 = vpop.trf.xlu0
        %v383 = vpop.trf.xlu0
        %v385 = vsel %vm277, %v376, 0
        %387 = vmatprep.subr.bf16.mxu0 0
        %388 = vmatpush1.bf16.msra.mxu0 %v326
        %389 = vmatprep.subr.bf16.mxu0 0
        %390 = vmatpush1.bf16.msra.mxu0 0
        %391 = vmatprep.subr.bf16.mxu0 0
        %392 = vmatpush1.bf16.msra.mxu0 0
        %393 = vmatprep.subr.bf16.mxu0 0
        %394 = vmatpush1.bf16.msra.mxu0 0
        %395 = vmatprep.subr.bf16.mxu0 0
        %396 = vmatpush1.bf16.msra.mxu0 0
        %397 = vmatprep.subr.bf16.mxu0 0
        %398 = vmatpush1.bf16.msra.mxu0 0
        %399 = vmatprep.subr.bf16.mxu0 0
        %400 = vmatpush1.bf16.msra.mxu0 0
        %401 = vmatprep.subr.bf16.mxu0 0
        %402 = vmatpush1.bf16.msra.mxu0 0
        %403 = vmatprep.subr.bf16.mxu0 0
        %404 = vmatpush1.bf16.msra.mxu0 0
        %405 = vmatprep.subr.bf16.mxu0 0
        %406 = vmatpush1.bf16.msra.mxu0 0
        %407 = vmatprep.subr.bf16.mxu0 0
        %408 = vmatpush1.bf16.msra.mxu0 0
        %409 = vmatprep.subr.bf16.mxu0 0
        %410 = vmatpush1.bf16.msra.mxu0 0
        %411 = vmatprep.subr.bf16.mxu0 0
        %412 = vmatpush1.bf16.msra.mxu0 0
        %413 = vmatprep.subr.bf16.mxu0 0
        %414 = vmatpush1.bf16.msra.mxu0 0
        %415 = vmatprep.subr.bf16.mxu0 0
        %416 = vmatpush1.bf16.msra.mxu0 0
        %417 = vmatprep.subr.bf16.mxu0 0
        %418 = vmatpush1.bf16.msra.mxu0 0
        %419 = vmatprep.mubr.bf16.mxu0 0
        %420 = vmatmul.mubr.bf16.gmra.mrb[0].mxu0 %v385
        %v421 = vpop.f32.mrb[0].mxu0
        %v422 = vadd.f32 0.0, %v421
        %v423 = vpop.f32.mrb[0].mxu0
        %v424 = vpop.f32.mrb[0].mxu0
        %v425 = vpop.f32.mrb[0].mxu0
        %426 = vdwg.mxu0
        %v427 = vadd.f32 %v363, %v422
        %v428 = vld [vmem:[%s225] sm:$0x1]
        %v429 = vpack.c.bf16 %v428, %v428
        %v430 = vunpack.c.l.bf16 %v429
        %v431 = vsub.f32 %v428, %v430
        %v432 = vpack.c.bf16 %v431, %v431
        %v434 = vsel %vm277, %v429, 0
        %436 = vmatprep.subr.bf16.mxu0 0
        %437 = vmatpush1.bf16.msra.mxu0 %v283
        %438 = vmatprep.subr.bf16.mxu0 0
        %439 = vmatpush1.bf16.msra.mxu0 0
        %440 = vmatprep.subr.bf16.mxu0 0
        %441 = vmatpush1.bf16.msra.mxu0 0
        %442 = vmatprep.subr.bf16.mxu0 0
        %443 = vmatpush1.bf16.msra.mxu0 0
        %444 = vmatprep.subr.bf16.mxu0 0
        %445 = vmatpush1.bf16.msra.mxu0 0
        %446 = vmatprep.subr.bf16.mxu0 0
        %447 = vmatpush1.bf16.msra.mxu0 0
        %448 = vmatprep.subr.bf16.mxu0 0
        %449 = vmatpush1.bf16.msra.mxu0 0
        %450 = vmatprep.subr.bf16.mxu0 0
        %451 = vmatpush1.bf16.msra.mxu0 0
        %452 = vmatprep.subr.bf16.mxu0 0
        %453 = vmatpush1.bf16.msra.mxu0 0
        %454 = vmatprep.subr.bf16.mxu0 0
        %455 = vmatpush1.bf16.msra.mxu0 0
        %456 = vmatprep.subr.bf16.mxu0 0
        %457 = vmatpush1.bf16.msra.mxu0 0
        %458 = vmatprep.subr.bf16.mxu0 0
        %459 = vmatpush1.bf16.msra.mxu0 0
        %460 = vmatprep.subr.bf16.mxu0 0
        %461 = vmatpush1.bf16.msra.mxu0 0
        %462 = vmatprep.subr.bf16.mxu0 0
        %463 = vmatpush1.bf16.msra.mxu0 0
        %464 = vmatprep.subr.bf16.mxu0 0
        %465 = vmatpush1.bf16.msra.mxu0 0
        %466 = vmatprep.subr.bf16.mxu0 0
        %467 = vmatpush1.bf16.msra.mxu0 0
        %468 = vmatprep.mubr.bf16.mxu0 0
        %469 = vmatmul.mubr.bf16.gmra.mrb[0].mxu0 %v434
        %v470 = vpop.f32.mrb[0].mxu0
        %v471 = vadd.f32 0.0, %v470
        %v472 = vpop.f32.mrb[0].mxu0
        %v473 = vpop.f32.mrb[0].mxu0
        %v474 = vpop.f32.mrb[0].mxu0
        %475 = vdwg.mxu0
        %476 = vmatprep.subr.bf16.mxu0 0
        %477 = vmatpush1.bf16.msra.mxu0 %v326
        %478 = vmatprep.subr.bf16.mxu0 0
        %479 = vmatpush1.bf16.msra.mxu0 0
        %480 = vmatprep.subr.bf16.mxu0 0
        %481 = vmatpush1.bf16.msra.mxu0 0
        %482 = vmatprep.subr.bf16.mxu0 0
        %483 = vmatpush1.bf16.msra.mxu0 0
        %484 = vmatprep.subr.bf16.mxu0 0
        %485 = vmatpush1.bf16.msra.mxu0 0
        %486 = vmatprep.subr.bf16.mxu0 0
        %487 = vmatpush1.bf16.msra.mxu0 0
        %488 = vmatprep.subr.bf16.mxu0 0
        %489 = vmatpush1.bf16.msra.mxu0 0
        %490 = vmatprep.subr.bf16.mxu0 0
        %491 = vmatpush1.bf16.msra.mxu0 0
        %492 = vmatprep.subr.bf16.mxu0 0
        %493 = vmatpush1.bf16.msra.mxu0 0
        %494 = vmatprep.subr.bf16.mxu0 0
        %495 = vmatpush1.bf16.msra.mxu0 0
        %496 = vmatprep.subr.bf16.mxu0 0
        %497 = vmatpush1.bf16.msra.mxu0 0
        %498 = vmatprep.subr.bf16.mxu0 0
        %499 = vmatpush1.bf16.msra.mxu0 0
        %500 = vmatprep.subr.bf16.mxu0 0
        %501 = vmatpush1.bf16.msra.mxu0 0
        %502 = vmatprep.subr.bf16.mxu0 0
        %503 = vmatpush1.bf16.msra.mxu0 0
        %504 = vmatprep.subr.bf16.mxu0 0
        %505 = vmatpush1.bf16.msra.mxu0 0
        %506 = vmatprep.subr.bf16.mxu0 0
        %507 = vmatpush1.bf16.msra.mxu0 0
        %508 = vmatprep.mubr.bf16.mxu0 0
        %509 = vmatmul.mubr.bf16.gmra.mrb[0].mxu0 %v434
        %v510 = vpop.f32.mrb[0].mxu0
        %v511 = vadd.f32 %v471, %v510
        %v512 = vpop.f32.mrb[0].mxu0
        %v513 = vpop.f32.mrb[0].mxu0
        %v514 = vpop.f32.mrb[0].mxu0
        %515 = vdwg.mxu0
        %v517 = vsel %vm277, %v432, 0
        %519 = vmatprep.subr.bf16.mxu0 0
        %520 = vmatpush1.bf16.msra.mxu0 %v326
        %521 = vmatprep.subr.bf16.mxu0 0
        %522 = vmatpush1.bf16.msra.mxu0 0
        %523 = vmatprep.subr.bf16.mxu0 0
        %524 = vmatpush1.bf16.msra.mxu0 0
        %525 = vmatprep.subr.bf16.mxu0 0
        %526 = vmatpush1.bf16.msra.mxu0 0
        %527 = vmatprep.subr.bf16.mxu0 0
        %528 = vmatpush1.bf16.msra.mxu0 0
        %529 = vmatprep.subr.bf16.mxu0 0
        %530 = vmatpush1.bf16.msra.mxu0 0
        %531 = vmatprep.subr.bf16.mxu0 0
        %532 = vmatpush1.bf16.msra.mxu0 0
        %533 = vmatprep.subr.bf16.mxu0 0
        %534 = vmatpush1.bf16.msra.mxu0 0
        %535 = vmatprep.subr.bf16.mxu0 0
        %536 = vmatpush1.bf16.msra.mxu0 0
        %537 = vmatprep.subr.bf16.mxu0 0
        %538 = vmatpush1.bf16.msra.mxu0 0
        %539 = vmatprep.subr.bf16.mxu0 0
        %540 = vmatpush1.bf16.msra.mxu0 0
        %541 = vmatprep.subr.bf16.mxu0 0
        %542 = vmatpush1.bf16.msra.mxu0 0
        %543 = vmatprep.subr.bf16.mxu0 0
        %544 = vmatpush1.bf16.msra.mxu0 0
        %545 = vmatprep.subr.bf16.mxu0 0
        %546 = vmatpush1.bf16.msra.mxu0 0
        %547 = vmatprep.subr.bf16.mxu0 0
        %548 = vmatpush1.bf16.msra.mxu0 0
        %549 = vmatprep.subr.bf16.mxu0 0
        %550 = vmatpush1.bf16.msra.mxu0 0
        %551 = vmatprep.mubr.bf16.mxu0 0
        %552 = vmatmul.mubr.bf16.gmra.mrb[0].mxu0 %v517
        %v553 = vpop.f32.mrb[0].mxu0
        %v554 = vadd.f32 0.0, %v553
        %v555 = vpop.f32.mrb[0].mxu0
        %v556 = vpop.f32.mrb[0].mxu0
        %v557 = vpop.f32.mrb[0].mxu0
        %558 = vdwg.mxu0
        %v559 = vadd.f32 %v511, %v554
        %v560 = vrot.slane %v427, 1
        %v561 = vlaneseq
        %v562 = vshrl.u32 %v561, 7
        %vm563 = vcmp.eq.s32.totalorder %v562, 7
        %v564 = vlaneseq
        %v565 = vshrl.u32 %v564, 7
        %v566 = vsub.s32 0, %v565
        %v567 = vrot.slane %v559, %v566
        %v568 = vsel %vm563, %v567, %v560
        %570 = vrot.lane.b32.xlu0 %v568, 8
        %v571 = vpop.permute.xlu0 %570
        %v573 = vadd.f32 %v427, %v571
        %575 = vrot.lane.b32.xlu0 %v573, 120
        %v576 = vpop.permute.xlu0 %575
        %578 = vst.msk [vmem:[%s251] sm:$0xff] %vm277, %v576
        %s579 = sand.u32 %s120, 1
        %s580 = scalar_lea.sflag [#allocation4], %s579
        %s581 = sand.u32 %s120, 1
        %s582 = smul.addr %s581, 8
        %s583 = scalar_lea.vmem [#allocation8], %s582
        // Predicated region
        $region45: #{tpu_custom_call.1} parent=31 // pred_check
          %p584 = pneg %p130
        $region46: #{tpu_custom_call.1} parent=31 // pred_check_branch
          %586 = sbr.rel (%p584) target = $region48
        $region47: #{tpu_custom_call.1} parent=31 // pred_region
          %s588 = ssub.s32 128, 128
          %589 = vsyncadd %s580, %s588
          %s590 = sadd.s32 %s26, %s25
          %s591 = smul.addr %s590, 128
          %s592 = scalar_lea.hbm %s3, %s591
          %s594 = sshll.u32 %s583, 4
          %s595 = int_to_ptr.vmem [resolvable:$true] %s594
          %597 = dma.vmem_to_hbm [thread:$0]  %s595, 128, %s592, %s580
        $region48: #{tpu_custom_call.1} parent=31 // pred_fallthru
          _
      $region32: #{tpu_custom_call.1} parent=5 // pred_fallthru
        _
      %p598 = scmp.le.s32.totalorder 2, %s16
      // Predicated region
      $region49: #{tpu_custom_call.1} parent=5 // pred_check
        %p599 = pneg %p598
      $region50: #{tpu_custom_call.1} parent=5 // pred_check_branch
        %601 = sbr.rel (%p599) target = $region52
      $region51: #{tpu_custom_call.1} parent=5 // pred_region
        %s602 = ssub.s32 %s16, 2
        // Predicated region
        $region53: #{tpu_custom_call.1} parent=51 // pred_check
          %p603 = pneg %p136
        $region54: #{tpu_custom_call.1} parent=51 // pred_check_branch
          %605 = sbr.rel (%p603) target = $region56
        $region55: #{tpu_custom_call.1} parent=51 // pred_region
          %s606 = sand.u32 %s121, 1
          %s607 = scalar_lea.sflag [#allocation4], %s606
          %s608 = sand.u32 %s121, 1
          %s609 = smul.addr %s608, 8
          %s610 = scalar_lea.vmem [#allocation8], %s609
          %611 = dma.done %s607, 128
        $region56: #{tpu_custom_call.1} parent=51 // pred_fallthru
          _
      $region52: #{tpu_custom_call.1} parent=5 // pred_fallthru
        _
    $region6: #{tpu_custom_call.1} parent=1 // loop_footer
      %s20 = sadd.s32 1, %s16
    $region7: #{tpu_custom_call.1} parent=1 // loop_footer_branch
      %15 = sbr.rel target = $region3
    $region8: #{tpu_custom_call.1} parent=1 // loop_exit
      _
    %612 = vsyncpa [#allocation3], 1
    %s613 = scalar_lea.sflag [#allocation3], 1
    %614 = vsyncpa %s613, 1
    %615 = vsyncpa [#allocation6], 1
    %616 = vsyncpa [#allocation4], 1
    %s617 = scalar_lea.sflag [#allocation4], 1
    %618 = vsyncpa %s617, 1

</llo_original>
